<compile_context>
chip_gen: v6e
topology: v6e:2x2x1
jax: 0.10.0
libtpu: 0.0.40
codegen_flags: <defaults>
</compile_context>

<pallas_src>
import functools

import jax
import jax.numpy as jnp
import numpy as np
from jax.experimental import pallas as pl
from jax.experimental.pallas import tpu as pltpu


# ----------------------------------------------------------------------------
# Generation-aware sizing helpers
# ----------------------------------------------------------------------------
@functools.lru_cache(maxsize=1)
def _tpu_vmem_bytes() -> int:
    """Physical per-core VMEM (128 MiB v5e/v6e, 64 MiB v7x); conservative fallback."""
    try:
        info = pltpu.get_tpu_info()
        for attr in ("vmem_capacity_bytes", "vmem_bytes", "vmem_size_bytes"):
            v = getattr(info, attr, None)
            if v:
                return int(v)
    except Exception:
        pass
    return 64 * 1024 * 1024


def _compiler_params() -> pltpu.CompilerParams:
    # Leading grid axis splits rows across TensorCores on v7x ("parallel");
    # the inner row axis carries the loss accumulators, so it is "arbitrary".
    # Scoped-VMEM limit: ~80% of physical, capped at 112 MiB => ~102 MiB on
    # v5e/v6e (128 MiB chips), ~51 MiB on v7x (64 MiB chips).
    vmem = _tpu_vmem_bytes()
    return pltpu.CompilerParams(
        dimension_semantics=("parallel", "arbitrary"),
        vmem_limit_bytes=min(int(vmem * 0.8), 112 * 1024 * 1024),
    )


def _pick_block_rows(n, *, hs, ht, vs, vmem_bytes):
    """Largest row tile that divides N, fits the per-generation VMEM budget and
    prefers MXU/vreg-friendly multiples (256, then 128, then 8)."""
    if n <= 8:
        return n
    # Rough per-row VMEM bytes: double-buffered bf16 hidden tiles + labels,
    # double-buffered bf16 logits output tile, ~6 live [*, Vs] f32 intermediates.
    per_row = 2 * (2 * hs + 2 * ht + 4) + 2 * 2 * vs + 6 * 4 * vs
    resident = 2 * 2 * vs * (hs + ht)              # double-buffered bf16 head weights
    budget = int(vmem_bytes * 0.55) - resident
    cap = max(8, budget // max(per_row, 1))
    target = int(min(1024, max(128, cap)))
    if n <= target:
        return n
    for step in (256, 128, 8):
        t = target - (target % step)
        while t >= step:
            if n % t == 0:
                return t
            t -= step
    return n


# ----------------------------------------------------------------------------
# Kernel 1 (training): fused student/teacher LM heads + CE + fused KL partials.
# ----------------------------------------------------------------------------
def _distill_train_kernel(sh_ref, ws_ref, th_ref, wt_ref, lbl_ref,
                          logits_ref, part_ref):
    """One grid step = one block of `tm` rows on one core.

    Emits the student logits tile (bf16) and accumulates this core's partial
    sums [kl_sum, nll_sum, valid_count] into lanes 0..2 of its resident
    partials block. Cross-core combine + blend happen outside the kernel.
    """
    i = pl.program_id(1)                       # inner row-block step (this core)

    @pl.when(i == 0)
    def _init():
        part_ref[...] = jnp.zeros_like(part_ref)

    # --- LM heads on the MXU: bf16 operands, f32 accumulate. Teacher head was
    #     pre-sliced to the student vocab, so the (Vt - Vs) columns never exist.
    s = jnp.dot(sh_ref[...], ws_ref[...], preferred_element_type=jnp.float32)
    logits_ref[...] = s.astype(jnp.bfloat16)   # bf16 writeback, once, lane-dense
    t = jnp.dot(th_ref[...], wt_ref[...], preferred_element_type=jnp.float32)

    tm, V = s.shape
    lbl = lbl_ref[...]                         # [tm, 1] int32

    # --- student softmax pieces (shared by CE and the fused KL) ---
    s_max = jnp.max(s, axis=-1, keepdims=True)
    s_exp = jnp.exp(s - s_max)
    s_sum = jnp.sum(s_exp, axis=-1, keepdims=True)

    # --- teacher softmax pieces ---
    t_max = jnp.max(t, axis=-1, keepdims=True)
    t_shift = t - t_max
    t_exp = jnp.exp(t_shift)
    t_sum = jnp.sum(t_exp, axis=-1, keepdims=True)

    # KLDivLoss(reduction='batchmean') with the module's (intentional) bug kept
    # faithfully: softmax(student) probabilities are fed as the "log-prob"
    # input, i.e.   kl = sum p_t * (log p_t - p_s) / N.
    # Fused into two lane reductions + per-row scalar math; p_s / p_t / logp_t
    # are never materialized as [tm, V] tensors:
    #   kl_row = sum(t_exp*t_shift)/t_sum - log(t_sum) - sum(t_exp*s_exp)/(t_sum*s_sum)
    a_row = jnp.sum(t_exp * t_shift, axis=-1, keepdims=True)   # [tm, 1]
    b_row = jnp.sum(t_exp * s_exp, axis=-1, keepdims=True)     # [tm, 1]
    kl_rows = a_row / t_sum - jnp.log(t_sum) - b_row / (t_sum * s_sum)

    # --- student CE over shifted labels (ignore_index = -100):
    #     nll = (log(sum exp) + max) - logit[label]; select-sum, no one-hot slab.
    col = jax.lax.broadcasted_iota(jnp.int32, (tm, V), 1)
    sel = jnp.sum(jnp.where(col == lbl, s, 0.0), axis=-1, keepdims=True)
    nll = (jnp.log(s_sum) + s_max) - sel                        # [tm, 1]
    valid = (lbl != -100).astype(jnp.float32)                   # [tm, 1]

    kl_part = jnp.sum(kl_rows)
    nll_part = jnp.sum(nll * valid)
    cnt_part = jnp.sum(valid)

    # Accumulate the three scalars into lanes 0..2 of this core's partials
    # block (f32; for very large N consider per-step VMEM partials / Kahan).
    lane = jax.lax.broadcasted_iota(jnp.int32, (1, 8, 128), 2)
    contrib = jnp.where(lane == 0, kl_part,
               jnp.where(lane == 1, nll_part,
                jnp.where(lane == 2, cnt_part, 0.0)))
    part_ref[...] += contrib


def distill_train(s_hidden, w_s, t_hidden, w_t_sliced, shifted_labels,
                  *, block_rows, ncores):
    N, Hs = s_hidden.shape
    Vs = w_s.shape[1]
    Ht = t_hidden.shape[1]
    tm = block_rows
    assert N % (ncores * tm) == 0
    nblk = N // (ncores * tm)
    row = lambda c, i: (c * nblk + i, 0)
    return pl.pallas_call(
        _distill_train_kernel,
        out_shape=(
            jax.ShapeDtypeStruct((N, Vs), jnp.bfloat16),          # student logits (bf16)
            jax.ShapeDtypeStruct((ncores, 8, 128), jnp.float32),  # per-core [kl, nll, cnt]
        ),
        grid=(ncores, nblk),
        in_specs=[
            pl.BlockSpec((tm, Hs), row),                    # student hidden tile
            pl.BlockSpec((Hs, Vs), lambda c, i: (0, 0)),    # student head (resident)
            pl.BlockSpec((tm, Ht), row),                    # teacher hidden tile
            pl.BlockSpec((Ht, Vs), lambda c, i: (0, 0)),    # teacher head (pre-sliced, resident)
            pl.BlockSpec((tm, 1), row),                     # shifted labels
        ],
        out_specs=(
            pl.BlockSpec((tm, Vs), row),                            # logits tile
            pl.BlockSpec((1, 8, 128), lambda c, i: (c, 0, 0)),      # per-core partials
        ),
        compiler_params=_compiler_params(),
    )(s_hidden, w_s, t_hidden, w_t_sliced, shifted_labels)


# ----------------------------------------------------------------------------
# Kernel 2 (eval): fused student LM head + shifted CE only (no teacher / KL).
# ----------------------------------------------------------------------------
def _ce_only_kernel(sh_ref, ws_ref, lbl_ref, logits_ref, part_ref):
    i = pl.program_id(1)

    @pl.when(i == 0)
    def _init():
        part_ref[...] = jnp.zeros_like(part_ref)

    s = jnp.dot(sh_ref[...], ws_ref[...], preferred_element_type=jnp.float32)
    logits_ref[...] = s.astype(jnp.bfloat16)

    tm, V = s.shape
    lbl = lbl_ref[...]
    s_max = jnp.max(s, axis=-1, keepdims=True)
    s_sum = jnp.sum(jnp.exp(s - s_max), axis=-1, keepdims=True)
    col = jax.lax.broadcasted_iota(jnp.int32, (tm, V), 1)
    sel = jnp.sum(jnp.where(col == lbl, s, 0.0), axis=-1, keepdims=True)
    nll = (jnp.log(s_sum) + s_max) - sel
    valid = (lbl != -100).astype(jnp.float32)

    nll_part = jnp.sum(nll * valid)
    cnt_part = jnp.sum(valid)

    lane = jax.lax.broadcasted_iota(jnp.int32, (1, 8, 128), 2)
    contrib = jnp.where(lane == 1, nll_part,
               jnp.where(lane == 2, cnt_part, 0.0))
    part_ref[...] += contrib


def ce_only(s_hidden, w_s, shifted_labels, *, block_rows, ncores):
    N, Hs = s_hidden.shape
    Vs = w_s.shape[1]
    tm = block_rows
    assert N % (ncores * tm) == 0
    nblk = N // (ncores * tm)
    row = lambda c, i: (c * nblk + i, 0)
    return pl.pallas_call(
        _ce_only_kernel,
        out_shape=(
            jax.ShapeDtypeStruct((N, Vs), jnp.bfloat16),
            jax.ShapeDtypeStruct((ncores, 8, 128), jnp.float32),
        ),
        grid=(ncores, nblk),
        in_specs=[
            pl.BlockSpec((tm, Hs), row),
            pl.BlockSpec((Hs, Vs), lambda c, i: (0, 0)),
            pl.BlockSpec((tm, 1), row),
        ],
        out_specs=(
            pl.BlockSpec((tm, Vs), row),
            pl.BlockSpec((1, 8, 128), lambda c, i: (c, 0, 0)),
        ),
        compiler_params=_compiler_params(),
    )(s_hidden, w_s, shifted_labels)


# ----------------------------------------------------------------------------
# Synthetic student / teacher causal-LM stubs + distill wrapper (glue)
# ----------------------------------------------------------------------------
class MyLLMDistillWrapperPallas:
    def __init__(self, key, *, vocab_student=128, vocab_teacher=256,
                 hidden_student=32, hidden_teacher=48,
                 min_kl=0.3, max_kl=0.7, block_rows=None):
        assert vocab_teacher >= vocab_student
        self.min_kl = float(min_kl)
        self.max_kl = float(max_kl)
        self.vocab_student = vocab_student
        self.vocab_teacher = vocab_teacher
        self.block_rows = block_rows
        k1, k2, k3, k4 = jax.random.split(key, 4)
        # Student params. Head kept in bf16: bf16 x bf16 -> f32 on the MXU gives
        # 2-3x the throughput of f32 x f32 on v5e/v6e/v7x.
        self.s_embed = jax.random.normal(k1, (vocab_student, hidden_student),
                                         jnp.float32) * 0.02
        self.s_head = (jax.random.normal(k2, (hidden_student, vocab_student),
                                         jnp.float32) * 0.02).astype(jnp.bfloat16)
        # Teacher params (bf16, standing in for the torch.float16 teacher).
        self.t_embed = (jax.random.normal(k3, (vocab_teacher, hidden_teacher),
                                          jnp.float32) * 0.02).astype(jnp.bfloat16)
        self.t_head = (jax.random.normal(k4, (hidden_teacher, vocab_teacher),
                                         jnp.float32) * 0.02).astype(jnp.bfloat16)
        # Pre-slice the teacher head to the student vocab ONCE, so forward()
        # does not re-materialize an [Ht, Vs] HBM array every training step.
        self.t_head_sliced = self.t_head[:, :vocab_student]
        self.training = True

    def _shifted_labels(self, labels):
        B, S = labels.shape
        # HF causal-LM shift: CE(logits[:, :-1], labels[:, 1:]) folded into a
        # flat [N, 1] tensor with -100 (ignore_index) on each last position.
        return jnp.concatenate(
            [labels[:, 1:], jnp.full((B, 1), -100, dtype=jnp.int32)], axis=1
        ).reshape(-1, 1).astype(jnp.int32)

    def forward(self, input_ids, labels, step=0, total_steps=10000):
        B, S = input_ids.shape
        N = B * S
        Vs = self.vocab_student
        tm = self.block_rows if self.block_rows is not None else _pick_block_rows(
            N, hs=self.s_embed.shape[1], ht=self.t_embed.shape[1], vs=Vs,
            vmem_bytes=_tpu_vmem_bytes())
        assert N % tm == 0, "N must be divisible by the row tile"
        # Split the row reduction across both TensorCores (v7x) when possible.
        ncores = 2 if (N // tm) % 2 == 0 else 1

        flat_ids = input_ids.reshape(-1)
        s_hidden = jnp.take(self.s_embed, flat_ids, axis=0).astype(jnp.bfloat16)  # [N, Hs]
        shifted = self._shifted_labels(labels)                                    # [N, 1]

        if self.training:
            t_hidden = jnp.take(self.t_embed, flat_ids, axis=0)                   # [N, Ht] bf16
            logits_flat, partials = distill_train(
                s_hidden, self.s_head, t_hidden, self.t_head_sliced, shifted,
                block_rows=tm, ncores=ncores)
        else:
            # Eval: CE only -- no teacher forward, no KL work.
            logits_flat, partials = ce_only(s_hidden, self.s_head, shifted,
                                            block_rows=tm, ncores=ncores)

        # Tiny cross-core combine + kl_weight blend outside the kernel (3 scalars).
        p = jnp.sum(partials[:, 0, :], axis=0)            # lanes 0..2 = [kl, nll, count]
        kl_sum, nll_sum, valid = p[0], p[1], p[2]
        ce_loss = nll_sum / jnp.maximum(valid, 1.0)        # guard all-ignored 0/0
        if self.training:
            kl_loss = kl_sum / N                           # KLDivLoss batchmean
            kl_weight = max(self.min_kl, self.max_kl - step / total_steps)
            loss = (1.0 - kl_weight) * ce_loss + kl_weight * kl_loss
        else:
            kl_loss = jnp.zeros((), jnp.float32)
            loss = ce_loss
        return loss, ce_loss, kl_loss, logits_flat.reshape(B, S, Vs)


# ----------------------------------------------------------------------------
# Pure-JAX reference for the distillation hot path -- sanity check.
# ----------------------------------------------------------------------------
def _ref_loss(s_logits, t_logits_sliced, shifted_labels, kl_weight):
    N, V = s_logits.shape
    p_s = jax.nn.softmax(s_logits, axis=-1)
    logp_t = jax.nn.log_softmax(t_logits_sliced, axis=-1)
    p_t = jnp.exp(logp_t)
    kl = jnp.sum(p_t * (logp_t - p_s)) / N
    logp_s = jax.nn.log_softmax(s_logits, axis=-1)
    lbl = shifted_labels[:, 0]
    valid = (lbl != -100)
    nll = -logp_s[jnp.arange(N), jnp.where(valid, lbl, 0)]
    ce = jnp.sum(nll * valid) / jnp.maximum(jnp.sum(valid), 1)
    return (1.0 - kl_weight) * ce + kl_weight * kl, ce, kl


if __name__ == "__main__":
    key = jax.random.PRNGKey(0)
    wk, dk = jax.random.split(key, 2)

    B, S = 2, 16                           # N = 32 rows, tiled as 2 blocks of 16
    wrapper = MyLLMDistillWrapperPallas(wk, block_rows=16)

    input_ids = jax.random.randint(dk, (B, S), 0, wrapper.vocab_student, jnp.int32)
    labels = input_ids                      # standard LM objective

    loss, ce_loss, kl_loss, logits = wrapper.forward(
        input_ids, labels, step=2000, total_steps=10000)
    jax.block_until_ready((loss, ce_loss, kl_loss, logits))

    # --- sanity check against a pure-JAX reference on identical math ---
    Vs = wrapper.vocab_student
    flat_ids = input_ids.reshape(-1)
    s_hidden = jnp.take(wrapper.s_embed, flat_ids, axis=0).astype(jnp.bfloat16)
    t_hidden = jnp.take(wrapper.t_embed, flat_ids, axis=0)
    s_logits_ref = jnp.dot(s_hidden, wrapper.s_head,
                           preferred_element_type=jnp.float32)
    t_logits_ref = jnp.dot(t_hidden, wrapper.t_head_sliced,
                           preferred_element_type=jnp.float32)
    shifted = wrapper._shifted_labels(labels)
    kl_w = max(wrapper.min_kl, wrapper.max_kl - 2000 / 10000)
    ref_loss, ref_ce, ref_kl = _ref_loss(s_logits_ref, t_logits_ref, shifted, kl_w)

    assert np.isfinite(float(loss)) and np.isfinite(float(ce_loss)) \
        and np.isfinite(float(kl_loss))
    # Logits are written back in bf16 -> relative tolerance ~2^-9.
    np.testing.assert_allclose(
        np.asarray(logits.astype(jnp.float32)).reshape(-1, Vs),
        np.asarray(s_logits_ref), rtol=2e-2, atol=1e-4)
    np.testing.assert_allclose(float(ce_loss), float(ref_ce), rtol=1e-3, atol=1e-3)
    np.testing.assert_allclose(float(kl_loss), float(ref_kl), rtol=1e-3, atol=1e-3)
    np.testing.assert_allclose(float(loss), float(ref_loss), rtol=1e-3, atol=2e-3)
    # Blend self-consistency against the kernel's own ce/kl.
    np.testing.assert_allclose(
        float(loss), (1.0 - kl_w) * float(ce_loss) + kl_w * float(kl_loss),
        rtol=1e-5, atol=1e-5)

    # --- single-"core" path (default row tile = full N) must agree ---
    wrapper.block_rows = None
    loss1, ce1, kl1, _ = wrapper.forward(input_ids, labels, step=2000, total_steps=10000)
    jax.block_until_ready((loss1, ce1, kl1))
    np.testing.assert_allclose(float(ce1), float(ce_loss), rtol=1e-4, atol=1e-4)
    np.testing.assert_allclose(float(kl1), float(kl_loss), rtol=1e-4, atol=1e-4)
    np.testing.assert_allclose(float(loss1), float(loss), rtol=1e-4, atol=1e-4)
    wrapper.block_rows = 16

    # --- eval path: CE-only kernel, no teacher / KL work ---
    wrapper.training = False
    eloss, ece, ekl, elogits = wrapper.forward(input_ids, labels)
    jax.block_until_ready((eloss, ece, ekl, elogits))
    assert np.isfinite(float(eloss))
    np.testing.assert_allclose(float(ece), float(ce_loss), rtol=1e-4, atol=1e-5)
    assert float(ekl) == 0.0

    print("KERNEL_OK")
</pallas_src>

<mosaic_0001>
module attributes {stable_mosaic.version = 11 : i64} {
  func.func @_distill_train_kernel(%arg0: i32, %arg1: i32, %arg2: memref<16x32xbf16, #tpu.memory_space<vmem>>, %arg3: memref<32x128xbf16, #tpu.memory_space<vmem>>, %arg4: memref<16x48xbf16, #tpu.memory_space<vmem>>, %arg5: memref<48x128xbf16, #tpu.memory_space<vmem>>, %arg6: memref<16x1xi32, #tpu.memory_space<vmem>>, %arg7: memref<16x128xbf16, #tpu.memory_space<vmem>>, %arg8: memref<1x8x128xf32, #tpu.memory_space<vmem>>) attributes {dimension_semantics = [#tpu.dimension_semantics<parallel>, #tpu.dimension_semantics<arbitrary>], iteration_bounds = array<i64: 2, 1>, scalar_prefetch = 0 : i64, scratch_operands = 0 : i64, tpu.core_type = #tpu.core_type<tc>, window_params = [{transform_indices = @transform_0, window_bounds = array<i64: 16, 32>}, {pipeline_mode = #tpu.pipeline_mode<synchronous>, transform_indices = @transform_1, window_bounds = array<i64: 32, 128>}, {transform_indices = @transform_2, window_bounds = array<i64: 16, 48>}, {pipeline_mode = #tpu.pipeline_mode<synchronous>, transform_indices = @transform_3, window_bounds = array<i64: 48, 128>}, {transform_indices = @transform_4, window_bounds = array<i64: 16, 1>}, {transform_indices = @transform_5, window_bounds = array<i64: 16, 128>}, {transform_indices = @transform_6, window_bounds = array<i64: 1, 8, 128>}]} {
    %c0_i32 = arith.constant 0 : i32
    %0 = arith.cmpi eq, %arg1, %c0_i32 : i32
    %1 = arith.extui %0 : i1 to i32
    %c0_i32_0 = arith.constant 0 : i32
    %2 = arith.cmpi ne, %1, %c0_i32_0 : i32
    scf.if %2 {
      %cst_32 = arith.constant 0.000000e+00 : f32
      %82 = vector.broadcast %cst_32 : f32 to vector<1x8x128xf32>
      %c0_33 = arith.constant 0 : index
      %c0_34 = arith.constant 0 : index
      %c0_35 = arith.constant 0 : index
      %83 = vector.load %arg8[%c0_33, %c0_34, %c0_35] : memref<1x8x128xf32, #tpu.memory_space<vmem>>, vector<1x8x128xf32>
      tpu.vector_store %arg8[%c0_33, %c0_34, %c0_35], %82 {strides = array<i32>} : memref<1x8x128xf32, #tpu.memory_space<vmem>>, vector<1x8x128xf32>,
    } else {
    }
    %c0 = arith.constant 0 : index
    %c0_1 = arith.constant 0 : index
    %3 = vector.load %arg2[%c0, %c0_1] : memref<16x32xbf16, #tpu.memory_space<vmem>>, vector<16x32xbf16>
    %c0_2 = arith.constant 0 : index
    %c0_3 = arith.constant 0 : index
    %4 = vector.load %arg3[%c0_2, %c0_3] : memref<32x128xbf16, #tpu.memory_space<vmem>>, vector<32x128xbf16>
    %cst = arith.constant dense<0.000000e+00> : vector<16x128xf32>
    %5 = tpu.matmul %3, %4, %cst {dimension_numbers = #tpu.dot_dimension_numbers<[1], [0], [0], [1], [0, 0, 1, 1], [], []>} : vector<16x32xbf16>, vector<32x128xbf16>, vector<16x128xf32> -> vector<16x128xf32>
    %6 = arith.truncf %5 : vector<16x128xf32> to vector<16x128xbf16>
    %c0_4 = arith.constant 0 : index
    %c0_5 = arith.constant 0 : index
    %7 = vector.load %arg7[%c0_4, %c0_5] : memref<16x128xbf16, #tpu.memory_space<vmem>>, vector<16x128xbf16>
    tpu.vector_store %arg7[%c0_4, %c0_5], %6 {strides = array<i32>} : memref<16x128xbf16, #tpu.memory_space<vmem>>, vector<16x128xbf16>,
    %c0_6 = arith.constant 0 : index
    %c0_7 = arith.constant 0 : index
    %8 = vector.load %arg4[%c0_6, %c0_7] : memref<16x48xbf16, #tpu.memory_space<vmem>>, vector<16x48xbf16>
    %c0_8 = arith.constant 0 : index
    %c0_9 = arith.constant 0 : index
    %9 = vector.load %arg5[%c0_8, %c0_9] : memref<48x128xbf16, #tpu.memory_space<vmem>>, vector<48x128xbf16>
    %cst_10 = arith.constant dense<0.000000e+00> : vector<16x128xf32>
    %10 = tpu.matmul %8, %9, %cst_10 {dimension_numbers = #tpu.dot_dimension_numbers<[1], [0], [0], [1], [0, 0, 1, 1], [], []>} : vector<16x48xbf16>, vector<48x128xbf16>, vector<16x128xf32> -> vector<16x128xf32>
    %c0_11 = arith.constant 0 : index
    %c0_12 = arith.constant 0 : index
    %11 = vector.load %arg6[%c0_11, %c0_12] : memref<16x1xi32, #tpu.memory_space<vmem>>, vector<16x1xi32>
    %cst_13 = arith.constant dense<0xFF800000> : vector<16xf32>
    %12 = vector.multi_reduction <maximumf>, %5, %cst_13 [1] : vector<16x128xf32> to vector<16xf32>
    %13 = vector.shape_cast %12 : vector<16xf32> to vector<16x1xf32>
    %14 = vector.broadcast %13 : vector<16x1xf32> to vector<16x128xf32>
    %15 = arith.subf %5, %14 : vector<16x128xf32>
    %16 = math.exp %15 : vector<16x128xf32>
    %cst_14 = arith.constant dense<0.000000e+00> : vector<16xf32>
    %17 = vector.multi_reduction <add>, %16, %cst_14 [1] : vector<16x128xf32> to vector<16xf32>
    %18 = vector.shape_cast %17 : vector<16xf32> to vector<16x1xf32>
    %cst_15 = arith.constant dense<0xFF800000> : vector<16xf32>
    %19 = vector.multi_reduction <maximumf>, %10, %cst_15 [1] : vector<16x128xf32> to vector<16xf32>
    %20 = vector.shape_cast %19 : vector<16xf32> to vector<16x1xf32>
    %21 = vector.broadcast %20 : vector<16x1xf32> to vector<16x128xf32>
    %22 = arith.subf %10, %21 : vector<16x128xf32>
    %23 = math.exp %22 : vector<16x128xf32>
    %cst_16 = arith.constant dense<0.000000e+00> : vector<16xf32>
    %24 = vector.multi_reduction <add>, %23, %cst_16 [1] : vector<16x128xf32> to vector<16xf32>
    %25 = vector.shape_cast %24 : vector<16xf32> to vector<16x1xf32>
    %26 = arith.mulf %23, %22 : vector<16x128xf32>
    %cst_17 = arith.constant dense<0.000000e+00> : vector<16xf32>
    %27 = vector.multi_reduction <add>, %26, %cst_17 [1] : vector<16x128xf32> to vector<16xf32>
    %28 = vector.shape_cast %27 : vector<16xf32> to vector<16x1xf32>
    %29 = arith.mulf %23, %16 : vector<16x128xf32>
    %cst_18 = arith.constant dense<0.000000e+00> : vector<16xf32>
    %30 = vector.multi_reduction <add>, %29, %cst_18 [1] : vector<16x128xf32> to vector<16xf32>
    %31 = vector.shape_cast %30 : vector<16xf32> to vector<16x1xf32>
    %32 = arith.divf %28, %25 : vector<16x1xf32>
    %33 = math.log %25 : vector<16x1xf32>
    %34 = arith.subf %32, %33 : vector<16x1xf32>
    %35 = arith.mulf %25, %18 : vector<16x1xf32>
    %36 = arith.divf %31, %35 : vector<16x1xf32>
    %37 = arith.subf %34, %36 : vector<16x1xf32>
    %38 = tpu.iota {dimensions = array<i32: 1>} : vector<16x128xi32>
    %39 = vector.broadcast %11 : vector<16x1xi32> to vector<16x128xi32>
    %40 = arith.cmpi eq, %38, %39 : vector<16x128xi32>
    %cst_19 = arith.constant 0.000000e+00 : f32
    %41 = vector.broadcast %cst_19 : f32 to vector<16x128xf32>
    %42 = arith.select %40, %5, %41 : vector<16x128xi1>, vector<16x128xf32>
    %cst_20 = arith.constant dense<0.000000e+00> : vector<16xf32>
    %43 = vector.multi_reduction <add>, %42, %cst_20 [1] : vector<16x128xf32> to vector<16xf32>
    %44 = vector.shape_cast %43 : vector<16xf32> to vector<16x1xf32>
    %45 = math.log %18 : vector<16x1xf32>
    %46 = arith.addf %45, %13 : vector<16x1xf32>
    %47 = arith.subf %46, %44 : vector<16x1xf32>
    %c-100_i32 = arith.constant -100 : i32
    %48 = vector.broadcast %c-100_i32 : i32 to vector<16x1xi32>
    %49 = arith.cmpi ne, %11, %48 : vector<16x1xi32>
    %50 = arith.extui %49 : vector<16x1xi1> to vector<16x1xi32>
    %51 = arith.sitofp %50 : vector<16x1xi32> to vector<16x1xf32>
    %52 = vector.shape_cast %37 : vector<16x1xf32> to vector<1x16x1xf32>
    %cst_21 = arith.constant dense<0.000000e+00> : vector<1xf32>
    %53 = vector.multi_reduction <add>, %52, %cst_21 [1, 2] : vector<1x16x1xf32> to vector<1xf32>
    %54 = vector.shape_cast %53 : vector<1xf32> to vector<1x1x1xf32>
    %55 = vector.extract %54[0, 0, 0] : f32 from vector<1x1x1xf32>
    %56 = arith.mulf %47, %51 : vector<16x1xf32>
    %57 = vector.shape_cast %56 : vector<16x1xf32> to vector<1x16x1xf32>
    %cst_22 = arith.constant dense<0.000000e+00> : vector<1xf32>
    %58 = vector.multi_reduction <add>, %57, %cst_22 [1, 2] : vector<1x16x1xf32> to vector<1xf32>
    %59 = vector.shape_cast %58 : vector<1xf32> to vector<1x1x1xf32>
    %60 = vector.extract %59[0, 0, 0] : f32 from vector<1x1x1xf32>
    %61 = vector.shape_cast %51 : vector<16x1xf32> to vector<1x16x1xf32>
    %cst_23 = arith.constant dense<0.000000e+00> : vector<1xf32>
    %62 = vector.multi_reduction <add>, %61, %cst_23 [1, 2] : vector<1x16x1xf32> to vector<1xf32>
    %63 = vector.shape_cast %62 : vector<1xf32> to vector<1x1x1xf32>
    %64 = vector.extract %63[0, 0, 0] : f32 from vector<1x1x1xf32>
    %65 = tpu.iota {dimensions = array<i32: 2>} : vector<1x8x128xi32>
    %c0_i32_24 = arith.constant 0 : i32
    %66 = vector.broadcast %c0_i32_24 : i32 to vector<1x8x128xi32>
    %67 = arith.cmpi eq, %65, %66 : vector<1x8x128xi32>
    %c1_i32 = arith.constant 1 : i32
    %68 = vector.broadcast %c1_i32 : i32 to vector<1x8x128xi32>
    %69 = arith.cmpi eq, %65, %68 : vector<1x8x128xi32>
    %c2_i32 = arith.constant 2 : i32
    %70 = vector.broadcast %c2_i32 : i32 to vector<1x8x128xi32>
    %71 = arith.cmpi eq, %65, %70 : vector<1x8x128xi32>
    %cst_25 = arith.constant 0.000000e+00 : f32
    %72 = vector.broadcast %64 : f32 to vector<1x8x128xf32>
    %73 = vector.broadcast %cst_25 : f32 to vector<1x8x128xf32>
    %74 = arith.select %71, %72, %73 : vector<1x8x128xi1>, vector<1x8x128xf32>
    %75 = vector.broadcast %60 : f32 to vector<1x8x128xf32>
    %76 = arith.select %69, %75, %74 : vector<1x8x128xi1>, vector<1x8x128xf32>
    %77 = vector.broadcast %55 : f32 to vector<1x8x128xf32>
    %78 = arith.select %67, %77, %76 : vector<1x8x128xi1>, vector<1x8x128xf32>
    %c0_26 = arith.constant 0 : index
    %c0_27 = arith.constant 0 : index
    %c0_28 = arith.constant 0 : index
    %79 = vector.load %arg8[%c0_26, %c0_27, %c0_28] : memref<1x8x128xf32, #tpu.memory_space<vmem>>, vector<1x8x128xf32>
    %80 = arith.addf %79, %78 : vector<1x8x128xf32>
    %c0_29 = arith.constant 0 : index
    %c0_30 = arith.constant 0 : index
    %c0_31 = arith.constant 0 : index
    %81 = vector.load %arg8[%c0_29, %c0_30, %c0_31] : memref<1x8x128xf32, #tpu.memory_space<vmem>>, vector<1x8x128xf32>
    tpu.vector_store %arg8[%c0_29, %c0_30, %c0_31], %80 {strides = array<i32>} : memref<1x8x128xf32, #tpu.memory_space<vmem>>, vector<1x8x128xf32>,
    return
  }
  func.func @transform_0(%arg0: i32, %arg1: i32) -> (i32, i32) {
    %c1_i32 = arith.constant 1 : i32
    %0 = arith.muli %arg0, %c1_i32 : i32
    %1 = arith.addi %0, %arg1 : i32
    %c0_i32 = arith.constant 0 : i32
    %c0_i32_0 = arith.constant 0 : i32
    return %1, %c0_i32 : i32, i32
  }
  func.func @transform_1(%arg0: i32, %arg1: i32) -> (i32, i32) {
    %c0_i32 = arith.constant 0 : i32
    %c0_i32_0 = arith.constant 0 : i32
    %c0_i32_1 = arith.constant 0 : i32
    return %c0_i32, %c0_i32_0 : i32, i32
  }
  func.func @transform_2(%arg0: i32, %arg1: i32) -> (i32, i32) {
    %c1_i32 = arith.constant 1 : i32
    %0 = arith.muli %arg0, %c1_i32 : i32
    %1 = arith.addi %0, %arg1 : i32
    %c0_i32 = arith.constant 0 : i32
    %c0_i32_0 = arith.constant 0 : i32
    return %1, %c0_i32 : i32, i32
  }
  func.func @transform_3(%arg0: i32, %arg1: i32) -> (i32, i32) {
    %c0_i32 = arith.constant 0 : i32
    %c0_i32_0 = arith.constant 0 : i32
    %c0_i32_1 = arith.constant 0 : i32
    return %c0_i32, %c0_i32_0 : i32, i32
  }
  func.func @transform_4(%arg0: i32, %arg1: i32) -> (i32, i32) {
    %c1_i32 = arith.constant 1 : i32
    %0 = arith.muli %arg0, %c1_i32 : i32
    %1 = arith.addi %0, %arg1 : i32
    %c0_i32 = arith.constant 0 : i32
    %c0_i32_0 = arith.constant 0 : i32
    return %1, %c0_i32 : i32, i32
  }
  func.func @transform_5(%arg0: i32, %arg1: i32) -> (i32, i32) {
    %c1_i32 = arith.constant 1 : i32
    %0 = arith.muli %arg0, %c1_i32 : i32
    %1 = arith.addi %0, %arg1 : i32
    %c0_i32 = arith.constant 0 : i32
    %c0_i32_0 = arith.constant 0 : i32
    return %1, %c0_i32 : i32, i32
  }
  func.func @transform_6(%arg0: i32, %arg1: i32) -> (i32, i32, i32) {
    %c0_i32 = arith.constant 0 : i32
    %c0_i32_0 = arith.constant 0 : i32
    %c0_i32_1 = arith.constant 0 : i32
    return %arg0, %c0_i32, %c0_i32_0 : i32, i32, i32
  }
}

</mosaic_0001>

<llo_original>
// kernel: tpu_custom_call.1
$region0: #{tpu_custom_call.1}
  #allocation0 [shape = 'u32[]', space=smem, size = 0x4, offset = 0x4, fixed_abs, tag = 'smem constant byte address 0x4 - core index']
  #allocation1 [shape = 'u32[144,128]{1,0:T(1,128)}', space=vmem, size = 0x12000, scoped, tag = 'internal scratch']
  %s0 = inlined_call_operand.hbm [shape: bf16[32,32], index: 0, kind: input, shape index: {}]
  %s1 = inlined_call_operand.hbm [shape: bf16[32,128], index: 1, kind: input, shape index: {}]
  %s2 = inlined_call_operand.hbm [shape: bf16[32,48], index: 2, kind: input, shape index: {}]
  %s3 = inlined_call_operand.vmem [shape: bf16[48,128], index: 3, kind: input, shape index: {}]
  %s4 = inlined_call_operand.vmem [shape: s32[32,1], index: 4, kind: input, shape index: {}]
  %s5 = inlined_call_operand.hbm [shape: bf16[32,128], index: 5, kind: output, shape index: {0}]
  %s6 = inlined_call_operand.hbm [shape: f32[2,8,128], index: 6, kind: output, shape index: {1}]
  %7 = xla_tuple %s5, %s6
  %s8 = sld [smem:[#allocation0]]
  $region77: #{tpu_custom_call.1} parent=0
    _
  %s10 = ssub.s32 1, %s8
  %s11 = scalar_select 0, %s10, %s8
  $region1: #{tpu_custom_call.1} parent=0
    #allocation2 [shape = 'u8[8192]{0}', space=vmem, size = 0x2000, scoped, tag = 'input window, operand 0']
    #allocation3 [shape = 's32[2]{0}', space=sflag, size = 0x8, scoped, tag = 'scoped memory for tpu_custom_call.1']
    #allocation4 [shape = 's32[2]{0}', space=sflag, size = 0x8, scoped, tag = 'scoped memory for tpu_custom_call.1']
    #allocation5 [shape = 'u8[8192]{0}', space=vmem, size = 0x2000, scoped, tag = 'input window, operand 1, single buffered']
    #allocation6 [shape = 's32[1]{0}', space=sflag, size = 0x4, scoped, tag = 'scoped memory for tpu_custom_call.1']
    #allocation7 [shape = 'u8[8192]{0}', space=vmem, size = 0x2000, scoped, tag = 'input window, operand 2']
    #allocation8 [shape = 'u8[8192]{0}', space=vmem, size = 0x2000, scoped, tag = 'output window, operand 0']
    #allocation9 [shape = 'u8[8192]{0}', space=vmem, size = 0x2000, scoped, tag = 'output window, operand 1']
    #allocation10 [shape = 's32[2]{0}', space=sflag, size = 0x8, scoped, tag = 'scoped memory for tpu_custom_call.1']
    %12 = vsyncpa [#allocation3], 0
    %s13 = scalar_lea.sflag [#allocation3], 1
    %14 = vsyncpa %s13, 0
    %15 = vsyncpa [#allocation6], 0
    %16 = vsyncpa [#allocation4], 0
    %s17 = scalar_lea.sflag [#allocation4], 1
    %18 = vsyncpa %s17, 0
    %19 = vsyncpa [#allocation10], 0
    %s20 = scalar_lea.sflag [#allocation10], 1
    %21 = vsyncpa %s20, 0
    loop: start=0, step=1, limit=4
    $region2: #{tpu_custom_call.1} parent=1 // loop_pre_header
      _
    $region3: #{tpu_custom_call.1} parent=1 // loop_header
      %s23 = sphi 0, %s27
      %p24 = scmp.ge.s32.totalorder %s23, 4
      %s30 = sphi 0, %s42
      %s31 = sphi 0, %s38
      %s32 = sphi 0, %s30
      %s33 = sphi 0, %s31
      %s34 = sphi 0, %s32
      %s35 = sphi 0, %s33
      %s47 = sphi 0, %s49
      %s50 = sphi 0, %s47
      %s51 = sphi 0, %s50
      %s67 = sphi 0, %s51
      %s71 = sphi 0, %s71
      %s73 = sphi 0, %s71
      %s74 = sphi 0, %s73
      %s88 = sphi 0, %s74
      %s96 = sphi 0, %s98
      %s99 = sphi 0, %s96
      %s100 = sphi 0, %s99
      %s116 = sphi 0, %s100
      %s120 = sphi 0, %s120
      %s122 = sphi 0, %s120
      %s123 = sphi 0, %s122
      %s137 = sphi 0, %s123
      %s145 = sphi 0, %s147
      %s148 = sphi 0, %s145
      %s149 = sphi 0, %s148
      %s165 = sphi 0, %s149
      %s173 = sphi 0, %s175
      %s176 = sphi 0, %s173
      %s177 = sphi 0, %s176
      %s193 = sphi 0, %s177
      %s199 = sphi 0, %s201
      %s202 = sphi 0, %s199
      %s203 = sphi 0, %s202
      %s219 = sphi 0, %s203
    $region4: #{tpu_custom_call.1} parent=1 // loop_header_branch
      %26 = sbr.rel (%p24) target = $region8
    $region5: #{tpu_custom_call.1} parent=1 // loop_body
      %s28 = ssub.s32 %s23, 1
      %s29 = ssub.s32 %s23, 2
      %s36 = sadd.s32 1, %s31
      %p37 = scmp.ge.s32.totalorder %s36, 1
      %s38 = scalar_select %p37, 0, %s36
      %s39 = sadd.s32 1, %s30
      %s40 = scalar_select %p37, %s39, %s30
      %p41 = scmp.ge.s32.totalorder %s40, 2
      %s42 = scalar_select %p41, 0, %s40
      %s43 = sadd.s32 %s30, %s31
      %s44 = sadd.s32 %s42, %s38
      %s45 = ssub.s32 %s43, %s44
      %p46 = scmp.eq.s32.totalorder %s45, 0
      %s48 = sadd.s32 %s47, 1
      %s49 = scalar_select %p46, %s47, %s48
      %p52 = pneg %p46
      %p53 = scmp.eq.s32.totalorder %s23, 1
      %p54 = por %p52, %p53
      %p55 = scmp.ne.s32.totalorder %s47, %s50
      %p56 = scmp.eq.s32.totalorder %s23, 0
      %p57 = por %p55, %p56
      %p58 = scmp.ne.s32.totalorder %s47, %s50
      %p59 = scmp.eq.s32.totalorder %s28, 1
      %p60 = por %p58, %p59
      %p61 = scmp.ne.s32.totalorder %s50, %s51
      %p62 = scmp.eq.s32.totalorder %s28, 0
      %p63 = por %p61, %p62
      %p64 = scmp.ne.s32.totalorder %s50, %s51
      %p65 = scmp.eq.s32.totalorder %s29, 1
      %p66 = por %p64, %p65
      %p68 = scmp.ne.s32.totalorder %s51, %s67
      %p69 = scmp.eq.s32.totalorder %s29, 0
      %p70 = por %p68, %p69
      %s72 = sadd.s32 %s71, 1
      %p75 = scmp.eq.s32.totalorder %s23, 1
      %p76 = scmp.ne.s32.totalorder %s71, %s73
      %p77 = scmp.eq.s32.totalorder %s23, 0
      %p78 = por %p76, %p77
      %p79 = scmp.ne.s32.totalorder %s71, %s73
      %p80 = scmp.eq.s32.totalorder %s28, 1
      %p81 = por %p79, %p80
      %p82 = scmp.ne.s32.totalorder %s73, %s74
      %p83 = scmp.eq.s32.totalorder %s28, 0
      %p84 = por %p82, %p83
      %p85 = scmp.ne.s32.totalorder %s73, %s74
      %p86 = scmp.eq.s32.totalorder %s29, 1
      %p87 = por %p85, %p86
      %p89 = scmp.ne.s32.totalorder %s74, %s88
      %p90 = scmp.eq.s32.totalorder %s29, 0
      %p91 = por %p89, %p90
      %s92 = sadd.s32 %s30, %s31
      %s93 = sadd.s32 %s42, %s38
      %s94 = ssub.s32 %s92, %s93
      %p95 = scmp.eq.s32.totalorder %s94, 0
      %s97 = sadd.s32 %s96, 1
      %s98 = scalar_select %p95, %s96, %s97
      %p101 = pneg %p95
      %p102 = scmp.eq.s32.totalorder %s23, 1
      %p103 = por %p101, %p102
      %p104 = scmp.ne.s32.totalorder %s96, %s99
      %p105 = scmp.eq.s32.totalorder %s23, 0
      %p106 = por %p104, %p105
      %p107 = scmp.ne.s32.totalorder %s96, %s99
      %p108 = scmp.eq.s32.totalorder %s28, 1
      %p109 = por %p107, %p108
      %p110 = scmp.ne.s32.totalorder %s99, %s100
      %p111 = scmp.eq.s32.totalorder %s28, 0
      %p112 = por %p110, %p111
      %p113 = scmp.ne.s32.totalorder %s99, %s100
      %p114 = scmp.eq.s32.totalorder %s29, 1
      %p115 = por %p113, %p114
      %p117 = scmp.ne.s32.totalorder %s100, %s116
      %p118 = scmp.eq.s32.totalorder %s29, 0
      %p119 = por %p117, %p118
      %s121 = sadd.s32 %s120, 1
      %p124 = scmp.eq.s32.totalorder %s23, 1
      %p125 = scmp.ne.s32.totalorder %s120, %s122
      %p126 = scmp.eq.s32.totalorder %s23, 0
      %p127 = por %p125, %p126
      %p128 = scmp.ne.s32.totalorder %s120, %s122
      %p129 = scmp.eq.s32.totalorder %s28, 1
      %p130 = por %p128, %p129
      %p131 = scmp.ne.s32.totalorder %s122, %s123
      %p132 = scmp.eq.s32.totalorder %s28, 0
      %p133 = por %p131, %p132
      %p134 = scmp.ne.s32.totalorder %s122, %s123
      %p135 = scmp.eq.s32.totalorder %s29, 1
      %p136 = por %p134, %p135
      %p138 = scmp.ne.s32.totalorder %s123, %s137
      %p139 = scmp.eq.s32.totalorder %s29, 0
      %p140 = por %p138, %p139
      %s141 = sadd.s32 %s30, %s31
      %s142 = sadd.s32 %s42, %s38
      %s143 = ssub.s32 %s141, %s142
      %p144 = scmp.eq.s32.totalorder %s143, 0
      %s146 = sadd.s32 %s145, 1
      %s147 = scalar_select %p144, %s145, %s146
      %p150 = pneg %p144
      %p151 = scmp.eq.s32.totalorder %s23, 1
      %p152 = por %p150, %p151
      %p153 = scmp.ne.s32.totalorder %s145, %s148
      %p154 = scmp.eq.s32.totalorder %s23, 0
      %p155 = por %p153, %p154
      %p156 = scmp.ne.s32.totalorder %s145, %s148
      %p157 = scmp.eq.s32.totalorder %s28, 1
      %p158 = por %p156, %p157
      %p159 = scmp.ne.s32.totalorder %s148, %s149
      %p160 = scmp.eq.s32.totalorder %s28, 0
      %p161 = por %p159, %p160
      %p162 = scmp.ne.s32.totalorder %s148, %s149
      %p163 = scmp.eq.s32.totalorder %s29, 1
      %p164 = por %p162, %p163
      %p166 = scmp.ne.s32.totalorder %s149, %s165
      %p167 = scmp.eq.s32.totalorder %s29, 0
      %p168 = por %p166, %p167
      %s169 = sadd.s32 %s30, %s31
      %s170 = sadd.s32 %s42, %s38
      %s171 = ssub.s32 %s169, %s170
      %p172 = scmp.eq.s32.totalorder %s171, 0
      %s174 = sadd.s32 %s173, 1
      %s175 = scalar_select %p172, %s173, %s174
      %p178 = pneg %p172
      %p179 = scmp.eq.s32.totalorder %s23, 1
      %p180 = por %p178, %p179
      %p181 = scmp.ne.s32.totalorder %s173, %s176
      %p182 = scmp.eq.s32.totalorder %s23, 0
      %p183 = por %p181, %p182
      %p184 = scmp.ne.s32.totalorder %s173, %s176
      %p185 = scmp.eq.s32.totalorder %s28, 1
      %p186 = por %p184, %p185
      %p187 = scmp.ne.s32.totalorder %s176, %s177
      %p188 = scmp.eq.s32.totalorder %s28, 0
      %p189 = por %p187, %p188
      %p190 = scmp.ne.s32.totalorder %s176, %s177
      %p191 = scmp.eq.s32.totalorder %s29, 1
      %p192 = por %p190, %p191
      %p194 = scmp.ne.s32.totalorder %s177, %s193
      %p195 = scmp.eq.s32.totalorder %s29, 0
      %p196 = por %p194, %p195
      %s197 = ssub.s32 %s30, %s42
      %p198 = scmp.eq.s32.totalorder %s197, 0
      %s200 = sadd.s32 %s199, 1
      %s201 = scalar_select %p198, %s199, %s200
      %p204 = pneg %p198
      %p205 = scmp.eq.s32.totalorder %s23, 1
      %p206 = por %p204, %p205
      %p207 = scmp.ne.s32.totalorder %s199, %s202
      %p208 = scmp.eq.s32.totalorder %s23, 0
      %p209 = por %p207, %p208
      %p210 = scmp.ne.s32.totalorder %s199, %s202
      %p211 = scmp.eq.s32.totalorder %s28, 1
      %p212 = por %p210, %p211
      %p213 = scmp.ne.s32.totalorder %s202, %s203
      %p214 = scmp.eq.s32.totalorder %s28, 0
      %p215 = por %p213, %p214
      %p216 = scmp.ne.s32.totalorder %s202, %s203
      %p217 = scmp.eq.s32.totalorder %s29, 1
      %p218 = por %p216, %p217
      %p220 = scmp.ne.s32.totalorder %s203, %s219
      %p221 = scmp.eq.s32.totalorder %s29, 0
      %p222 = por %p220, %p221
      %p223 = scmp.le.s32.totalorder 1, %s23
      %p224 = scmp.lt.s32.totalorder %s23, 3
      %p225 = pnand %p223, %p224
      %p226 = pneg %p225
      // Predicated region
      $region9: #{tpu_custom_call.1} parent=5 // pred_check
        _
      $region10: #{tpu_custom_call.1} parent=5 // pred_check_branch
        %228 = sbr.rel (%p225) target = $region12
      $region11: #{tpu_custom_call.1} parent=5 // pred_region
        %s229 = ssub.s32 %s23, 1
        // Predicated region
        $region13: #{tpu_custom_call.1} parent=11 // pred_check
          %p230 = pneg %p84
        $region14: #{tpu_custom_call.1} parent=11 // pred_check_branch
          %232 = sbr.rel (%p230) target = $region16
        $region15: #{tpu_custom_call.1} parent=11 // pred_region
          %s234 = ssub.s32 256, 256
          %235 = vsyncadd [#allocation6], %s234
          %s236 = sshll.u32 [#allocation5], 4
          %s237 = int_to_ptr.vmem [resolvable:$true] %s236
          %242 = dma.hbm_to_vmem [thread:$0]  %s1, 256, %s237, [#allocation6], 64, 64, 4
        $region16: #{tpu_custom_call.1} parent=11 // pred_fallthru
          _
        // Predicated region
        $region17: #{tpu_custom_call.1} parent=11 // pred_check
          %p243 = pneg %p133
        $region18: #{tpu_custom_call.1} parent=11 // pred_check_branch
          %245 = sbr.rel (%p243) target = $region20
        $region19: #{tpu_custom_call.1} parent=11 // pred_region
          _
        $region20: #{tpu_custom_call.1} parent=11 // pred_fallthru
          _
      $region12: #{tpu_custom_call.1} parent=5 // pred_fallthru
        _
      %p246 = scmp.lt.s32.totalorder %s23, 2
      // Predicated region
      $region21: #{tpu_custom_call.1} parent=5 // pred_check
        %p247 = pneg %p246
      $region22: #{tpu_custom_call.1} parent=5 // pred_check_branch
        %249 = sbr.rel (%p247) target = $region24
      $region23: #{tpu_custom_call.1} parent=5 // pred_region
        // Predicated region
        $region25: #{tpu_custom_call.1} parent=23 // pred_check
          %p250 = pneg %p57
        $region26: #{tpu_custom_call.1} parent=23 // pred_check_branch
          %252 = sbr.rel (%p250) target = $region28
        $region27: #{tpu_custom_call.1} parent=23 // pred_region
          %s253 = sand.u32 %s23, 1
          %s254 = scalar_lea.sflag [#allocation3], %s253
          %s255 = sand.u32 %s47, 1
          %s256 = smul.addr %s255, 8
          %s257 = scalar_lea.vmem [#allocation2], %s256
          %s258 = sadd.s32 %s30, %s31
          %s259 = smul.u32 2, %s258
          %s261 = ssub.s32 128, 128
          %262 = vsyncadd %s254, %s261
          %s263 = smul.addr %s259, 64
          %s264 = scalar_lea.hbm %s0, %s263
          %s265 = sshll.u32 %s257, 4
          %s266 = int_to_ptr.vmem [resolvable:$true] %s265
          %271 = dma.hbm_to_vmem [thread:$0]  %s264, 128, %s266, %s254, 64, 64, 4
        $region28: #{tpu_custom_call.1} parent=23 // pred_fallthru
          _
        // Predicated region
        $region29: #{tpu_custom_call.1} parent=23 // pred_check
          %p272 = pneg %p106
        $region30: #{tpu_custom_call.1} parent=23 // pred_check_branch
          %274 = sbr.rel (%p272) target = $region32
        $region31: #{tpu_custom_call.1} parent=23 // pred_region
          %s275 = sand.u32 %s23, 1
          %s276 = scalar_lea.sflag [#allocation3], %s275
          %s277 = sand.u32 %s96, 1
          %s278 = smul.addr %s277, 8
          %s279 = scalar_lea.vmem [#allocation7], %s278
          %s280 = sadd.s32 %s30, %s31
          %s281 = smul.u32 2, %s280
          %s283 = ssub.s32 128, 128
          %284 = vsyncadd %s276, %s283
          %s285 = smul.addr %s281, 64
          %s286 = scalar_lea.hbm %s2, %s285
          %s287 = sshll.u32 %s279, 4
          %s288 = int_to_ptr.vmem [resolvable:$true] %s287
          %293 = dma.hbm_to_vmem [thread:$0]  %s286, 128, %s288, %s276, 64, 64, 4
        $region32: #{tpu_custom_call.1} parent=23 // pred_fallthru
          _
        // Predicated region
        $region33: #{tpu_custom_call.1} parent=23 // pred_check
          %p294 = pneg %p155
        $region34: #{tpu_custom_call.1} parent=23 // pred_check_branch
          %296 = sbr.rel (%p294) target = $region36
        $region35: #{tpu_custom_call.1} parent=23 // pred_region
          %s297 = sadd.s32 %s30, %s31
          %s298 = smul.u32 2, %s297
          %p299 = scmp.lt.s32.totalorder %s298, 3
          %s300 = scalar_select %p299, %s298, 3
          %s301 = smul.addr %s300, 8
          %s302 = scalar_lea.vmem %s4, %s301
          %s303 = sadd.s32 %s30, %s31
          %s304 = smul.u32 2, %s303
        $region36: #{tpu_custom_call.1} parent=23 // pred_fallthru
          _
      $region24: #{tpu_custom_call.1} parent=5 // pred_fallthru
        _
      %p305 = scmp.le.s32.totalorder 1, %s23
      %p306 = scmp.lt.s32.totalorder %s23, 3
      %p307 = pnand %p305, %p306
      %p308 = pneg %p307
      // Predicated region
      $region37: #{tpu_custom_call.1} parent=5 // pred_check
        _
      $region38: #{tpu_custom_call.1} parent=5 // pred_check_branch
        %310 = sbr.rel (%p307) target = $region40
      $region39: #{tpu_custom_call.1} parent=5 // pred_region
        %s311 = ssub.s32 %s23, 1
        %s312 = sand.u32 %s28, 1
        %s313 = scalar_lea.sflag [#allocation3], %s312
        %s314 = sand.u32 %s50, 1
        %s315 = smul.addr %s314, 8
        %s316 = scalar_lea.vmem [#allocation2], %s315
        // Predicated region
        $region41: #{tpu_custom_call.1} parent=39 // pred_check
          %p317 = pneg %p63
        $region42: #{tpu_custom_call.1} parent=39 // pred_check_branch
          %319 = sbr.rel (%p317) target = $region44
        $region43: #{tpu_custom_call.1} parent=39 // pred_region
          %320 = dma.done %s313, 128
        $region44: #{tpu_custom_call.1} parent=39 // pred_fallthru
          _
        // Predicated region
        $region45: #{tpu_custom_call.1} parent=39 // pred_check
          %p321 = pneg %p84
        $region46: #{tpu_custom_call.1} parent=39 // pred_check_branch
          %323 = sbr.rel (%p321) target = $region48
        $region47: #{tpu_custom_call.1} parent=39 // pred_region
          %324 = dma.done [#allocation6], 256
        $region48: #{tpu_custom_call.1} parent=39 // pred_fallthru
          _
        %s325 = sand.u32 %s28, 1
        %s326 = scalar_lea.sflag [#allocation3], %s325
        %s327 = sand.u32 %s99, 1
        %s328 = smul.addr %s327, 8
        %s329 = scalar_lea.vmem [#allocation7], %s328
        // Predicated region
        $region49: #{tpu_custom_call.1} parent=39 // pred_check
          %p330 = pneg %p112
        $region50: #{tpu_custom_call.1} parent=39 // pred_check_branch
          %332 = sbr.rel (%p330) target = $region52
        $region51: #{tpu_custom_call.1} parent=39 // pred_region
          %333 = dma.done %s326, 128
        $region52: #{tpu_custom_call.1} parent=39 // pred_fallthru
          _
        %s334 = sand.u32 %s28, 1
        %s335 = scalar_lea.sflag [#allocation3], %s334
        %s336 = sand.u32 %s50, 1
        %s337 = smul.addr %s336, 8
        %s338 = scalar_lea.vmem [#allocation2], %s337
        %p339 = pneg %p63
        %p340 = pneg %p60
        %p341 = pneg %p84
        %p342 = pneg %p81
        %s343 = sand.u32 %s28, 1
        %s344 = scalar_lea.sflag [#allocation3], %s343
        %s345 = sand.u32 %s99, 1
        %s346 = smul.addr %s345, 8
        %s347 = scalar_lea.vmem [#allocation7], %s346
        %p348 = pneg %p112
        %p349 = pneg %p109
        %p350 = pneg %p133
        %p351 = pneg %p130
        %s352 = sadd.s32 %s32, %s33
        %s353 = smul.u32 2, %s352
        %p354 = scmp.lt.s32.totalorder %s353, 3
        %s355 = scalar_select %p354, %s353, 3
        %s356 = smul.addr %s355, 8
        %s357 = scalar_lea.vmem %s4, %s356
        %p358 = pneg %p161
        %p359 = pneg %p158
        %p360 = pneg %p189
        %p361 = pneg %p186
        %s362 = sand.u32 %s176, 1
        %s363 = scalar_lea.sflag [#allocation4], %s362
        %s364 = sand.u32 %s176, 1
        %s365 = smul.addr %s364, 8
        %s366 = scalar_lea.vmem [#allocation8], %s365
        %p367 = pneg %p215
        %p368 = pneg %p212
        %s369 = sand.u32 %s202, 1
        %s370 = scalar_lea.sflag [#allocation10], %s369
        %s371 = sand.u32 %s202, 1
        %s372 = smul.addr %s371, 8
        %s373 = scalar_lea.vmem [#allocation9], %s372
        %s374 = sadd.s32 %s32, %s33
        %s375 = smul.u32 2, %s374
        %s376 = sadd.s32 %s32, %s33
        %s377 = smul.u32 2, %s376
        %s378 = sadd.s32 %s32, %s33
        %s379 = smul.u32 2, %s378
        %p380 = scmp.lt.s32.totalorder %s379, 3
        %s381 = scalar_select %p380, %s379, 3
        %s382 = smul.addr %s381, 8
        %s383 = scalar_lea.vmem %s4, %s382
        %s384 = sadd.s32 %s32, %s33
        %s385 = smul.u32 2, %s384
        %s386 = sadd.s32 %s32, %s33
        %s387 = smul.u32 2, %s386
        %p389 = scmp.eq.s32.totalorder %s33, 0
        // Predicated region
        $region53: #{tpu_custom_call.1} parent=39 // pred_check
          %p390 = pneg %p389
        $region54: #{tpu_custom_call.1} parent=39 // pred_check_branch
          %392 = sbr.rel (%p390) target = $region56
        $region55: #{tpu_custom_call.1} parent=39 // pred_region
          %393 = vst [vmem:[%s373] sm:$0xff] 0.0
        $region56: #{tpu_custom_call.1} parent=39 // pred_fallthru
          _
        %v394 = vld [vmem:[%s316] sm:$0xf]
        %v395 = vld [vmem:[%s316 + $0x4] sm:$0xf]
        %v396 = vld [vmem:[#allocation5] sm:$0xf]
        %v397 = vld [vmem:[#allocation5 + $0x4] sm:$0xf]
        %v398 = vld [vmem:[#allocation5 + $0x8] sm:$0xf]
        %v399 = vld [vmem:[#allocation5 + $0xc] sm:$0xf]
        %v402 = vunpack.c.l.b16 %v394
        %v403 = vunpack.c.l.b16 %v395
        %v404 = vpack.c.b16 %v403, %v402
        %v409 = vunpack.c.l.b16 %v396
        %v410 = vunpack.c.l.b16 %v397
        %v411 = vunpack.c.l.b16 %v398
        %v412 = vunpack.c.l.b16 %v399
        %v413 = vpack.c.b16 %v410, %v409
        %v414 = vpack.c.b16 %v412, %v411
        %vm417 = vcmask 261120
        %v419 = vsel %vm417, %v404, 0
        %421 = vmatprep.subr.bf16.mxu0 0
        %422 = vmatpush1.bf16.msra.mxu0 0
        %423 = vmatprep.subr.bf16.mxu0 0
        %424 = vmatpush1.bf16.msra.mxu0 0
        %425 = vmatprep.subr.bf16.mxu0 0
        %426 = vmatpush1.bf16.msra.mxu0 0
        %427 = vmatprep.subr.bf16.mxu0 0
        %428 = vmatpush1.bf16.msra.mxu0 0
        %429 = vmatprep.subr.bf16.mxu0 0
        %430 = vmatpush1.bf16.msra.mxu0 0
        %431 = vmatprep.subr.bf16.mxu0 0
        %432 = vmatpush1.bf16.msra.mxu0 0
        %433 = vmatprep.subr.bf16.mxu0 0
        %434 = vmatpush1.bf16.msra.mxu0 %v414
        %435 = vmatprep.subr.bf16.mxu0 0
        %436 = vmatpush1.bf16.msra.mxu0 %v413
        %437 = vmatprep.subr.bf16.mxu0 0
        %438 = vmatpush2.bf16.msra.mxu0 0
        %439 = vmatprep.subr.bf16.mxu0 0
        %440 = vmatpush2.bf16.msra.mxu0 0
        %441 = vmatprep.subr.bf16.mxu0 0
        %442 = vmatpush2.bf16.msra.mxu0 0
        %443 = vmatprep.subr.bf16.mxu0 0
        %444 = vmatpush2.bf16.msra.mxu0 0
        %445 = vmatprep.subr.bf16.mxu0 0
        %446 = vmatpush2.bf16.msra.mxu0 0
        %447 = vmatprep.subr.bf16.mxu0 0
        %448 = vmatpush2.bf16.msra.mxu0 0
        %449 = vmatprep.subr.bf16.mxu0 0
        %450 = vmatpush2.bf16.msra.mxu0 0
        %451 = vmatprep.subr.bf16.mxu0 0
        %452 = vmatpush2.bf16.msra.mxu0 0
        %453 = vmatprep.mubr.bf16.mxu0 0
        %454 = vmatmul.mubr.bf16.gmra.mxu0 %v419
        %v455 = vpop.f32.mrf.mxu0
        %v456 = vadd.f32 0.0, %v455
        %v457 = vpop.f32.mrf.mxu0
        %v458 = vpop.f32.mrf.mxu0
        %v459 = vadd.f32 0.0, %v458
        %v460 = vpop.f32.mrf.mxu0
        %461 = vdwg.mxu0
        %v462 = vpack.c.bf16 %v459, %v456
        %v464 = vunpack.c.l.b16 %v462
        %v465 = vunpack.c.h.b16 %v462
        %v466 = vpack.c.b16 %v464, %v464
        %v467 = vpack.c.b16 %v465, %v465
        %470 = vst [vmem:[%s366] sm:$0xf] %v466
        %471 = vst [vmem:[%s366 + $0x4] sm:$0xf] %v467
        %v472 = vld [vmem:[%s329] sm:$0xf]
        %v473 = vld [vmem:[%s329 + $0x4] sm:$0xf]
        %v474 = vld [vmem:[%s3] sm:$0xf]
        %v475 = vld [vmem:[%s3 + $0x4] sm:$0xf]
        %v476 = vld [vmem:[%s3 + $0x8] sm:$0xf]
        %v477 = vld [vmem:[%s3 + $0xc] sm:$0xf]
        %v478 = vld [vmem:[%s3 + $0x10] sm:$0xf]
        %v479 = vld [vmem:[%s3 + $0x14] sm:$0xf]
        %v482 = vunpack.c.l.b16 %v472
        %v483 = vunpack.c.l.b16 %v473
        %v484 = vpack.c.b16 %v483, %v482
        %v491 = vunpack.c.l.b16 %v474
        %v492 = vunpack.c.l.b16 %v475
        %v493 = vunpack.c.l.b16 %v476
        %v494 = vunpack.c.l.b16 %v477
        %v495 = vunpack.c.l.b16 %v478
        %v496 = vunpack.c.l.b16 %v479
        %v497 = vpack.c.b16 %v492, %v491
        %v498 = vpack.c.b16 %v494, %v493
        %v499 = vpack.c.b16 %v496, %v495
        %vm503 = vcmask 392192
        %v505 = vsel %vm503, %v484, 0
        %507 = vmatprep.subr.bf16.mxu0 0
        %508 = vmatpush1.bf16.msra.mxu0 0
        %509 = vmatprep.subr.bf16.mxu0 0
        %510 = vmatpush1.bf16.msra.mxu0 0
        %511 = vmatprep.subr.bf16.mxu0 0
        %512 = vmatpush1.bf16.msra.mxu0 0
        %513 = vmatprep.subr.bf16.mxu0 0
        %514 = vmatpush1.bf16.msra.mxu0 0
        %515 = vmatprep.subr.bf16.mxu0 0
        %516 = vmatpush1.bf16.msra.mxu0 0
        %517 = vmatprep.subr.bf16.mxu0 0
        %518 = vmatpush1.bf16.msra.mxu0 %v499
        %519 = vmatprep.subr.bf16.mxu0 0
        %520 = vmatpush1.bf16.msra.mxu0 %v498
        %521 = vmatprep.subr.bf16.mxu0 0
        %522 = vmatpush1.bf16.msra.mxu0 %v497
        %523 = vmatprep.subr.bf16.mxu0 0
        %524 = vmatpush2.bf16.msra.mxu0 0
        %525 = vmatprep.subr.bf16.mxu0 0
        %526 = vmatpush2.bf16.msra.mxu0 0
        %527 = vmatprep.subr.bf16.mxu0 0
        %528 = vmatpush2.bf16.msra.mxu0 0
        %529 = vmatprep.subr.bf16.mxu0 0
        %530 = vmatpush2.bf16.msra.mxu0 0
        %531 = vmatprep.subr.bf16.mxu0 0
        %532 = vmatpush2.bf16.msra.mxu0 0
        %533 = vmatprep.subr.bf16.mxu0 0
        %534 = vmatpush2.bf16.msra.mxu0 0
        %535 = vmatprep.subr.bf16.mxu0 0
        %536 = vmatpush2.bf16.msra.mxu0 0
        %537 = vmatprep.subr.bf16.mxu0 0
        %538 = vmatpush2.bf16.msra.mxu0 0
        %539 = vmatprep.mubr.bf16.mxu0 0
        %540 = vmatmul.mubr.bf16.gmra.mxu0 %v505
        %v541 = vpop.f32.mrf.mxu0
        %v542 = vadd.f32 0.0, %v541
        %v543 = vpop.f32.mrf.mxu0
        %v544 = vpop.f32.mrf.mxu0
        %v545 = vadd.f32 0.0, %v544
        %v546 = vpop.f32.mrf.mxu0
        %547 = vdwg.mxu0
        %v548 = vld [vmem:[%s383] sm:$0xff]
        %v549 = vld [vmem:[%s383 + $0x8] sm:$0xff]
        %550 = vmax.xlane.f32.xlu0 %v456
        %v551 = vpop.xlane.xlu0 %550
        %552 = vmax.xlane.f32.xlu0 %v459
        %v553 = vpop.xlane.xlu0 %552
        %v554 = vsub.f32 %v456, %v551
        %v555 = vsub.f32 %v459, %v553
        %v556 = vmul.f32 %v554, 1.442695
        %v557 = vpow.pop %v556
        %v558 = vmul.f32 %v555, 1.442695
        %v559 = vpow.pop %v558
        %560 = vadd.xlane.f32.xlu0 %v557
        %v561 = vpop.xlane.xlu0 %560
        %562 = vadd.xlane.f32.xlu0 %v559
        %v563 = vpop.xlane.xlu0 %562
        %564 = vmax.xlane.f32.xlu0 %v542
        %v565 = vpop.xlane.xlu0 %564
        %566 = vmax.xlane.f32.xlu0 %v545
        %v567 = vpop.xlane.xlu0 %566
        %v568 = vsub.f32 %v542, %v565
        %v569 = vsub.f32 %v545, %v567
        %v570 = vmul.f32 %v568, 1.442695
        %v571 = vpow.pop %v570
        %v572 = vmul.f32 %v569, 1.442695
        %v573 = vpow.pop %v572
        %574 = vadd.xlane.f32.xlu0 %v571
        %v575 = vpop.xlane.xlu0 %574
        %576 = vadd.xlane.f32.xlu0 %v573
        %v577 = vpop.xlane.xlu0 %576
        %v578 = vmul.f32 %v571, %v568
        %v579 = vmul.f32 %v573, %v569
        %580 = vadd.xlane.f32.xlu0 %v578
        %v581 = vpop.xlane.xlu0 %580
        %582 = vadd.xlane.f32.xlu0 %v579
        %v583 = vpop.xlane.xlu0 %582
        %v584 = vmul.f32 %v571, %v557
        %v585 = vmul.f32 %v573, %v559
        %586 = vadd.xlane.f32.xlu0 %v584
        %v587 = vpop.xlane.xlu0 %586
        %588 = vadd.xlane.f32.xlu0 %v585
        %v589 = vpop.xlane.xlu0 %588
        %v590 = vrcp.pop %v575
        %v591 = vmul.f32 %v581, %v590
        %v592 = vrcp.pop %v577
        %v593 = vmul.f32 %v583, %v592
        %v594 = vlog2.pop %v575
        %v595 = vmul.f32 %v594, 0.6931472
        %v596 = vlog2.pop %v577
        %v597 = vmul.f32 %v596, 0.6931472
        %v598 = vsub.f32 %v591, %v595
        %v599 = vsub.f32 %v593, %v597
        %v600 = vmul.f32 %v575, %v561
        %v601 = vmul.f32 %v577, %v563
        %v602 = vrcp.pop %v600
        %v603 = vmul.f32 %v587, %v602
        %v604 = vrcp.pop %v601
        %v605 = vmul.f32 %v589, %v604
        %v606 = vsub.f32 %v598, %v603
        %v607 = vsub.f32 %v599, %v605
        %v608 = vlaneseq
        %v609 = vand.u32 %v608, 127
        %610 = vset.pattern.permute.xlu0 0
        %611 = vperm.xlu0 %610, %v548
        %v612 = vpop.permute.xlu0 %611
        %613 = vset.pattern.permute.xlu0 0
        %614 = vperm.xlu0 %613, %v549
        %v615 = vpop.permute.xlu0 %614
        %vm616 = vcmp.eq.s32.totalorder %v609, %v612
        %vm617 = vcmp.eq.s32.totalorder %v609, %v615
        %v618 = vsel %vm616, %v456, 0.0
        %v619 = vsel %vm617, %v459, 0.0
        %620 = vadd.xlane.f32.xlu0 %v618
        %v621 = vpop.xlane.xlu0 %620
        %622 = vadd.xlane.f32.xlu0 %v619
        %v623 = vpop.xlane.xlu0 %622
        %v624 = vlog2.pop %v561
        %v625 = vmul.f32 %v624, 0.6931472
        %v626 = vlog2.pop %v563
        %v627 = vmul.f32 %v626, 0.6931472
        %v628 = vadd.f32 %v625, %v551
        %v629 = vadd.f32 %v627, %v553
        %v630 = vsub.f32 %v628, %v621
        %v631 = vsub.f32 %v629, %v623
        %vm632 = vcmp.ne.s32.totalorder %v548, 4294967196
        %vm633 = vcmp.ne.s32.totalorder %v549, 4294967196
        %v634 = vsel %vm632, 1, 0
        %v635 = vsel %vm633, 1, 0
        %v636 = vcvt.s32.f32 %v634
        %v637 = vcvt.s32.f32 %v635
        %vm638 = vcmask 7168
        %v639 = vsel %vm638, %v606, 0.0
        %v640 = vsel %vm638, %v607, 0.0
        %v641 = vadd.f32 %v639, %v640
        %642 = vadd.xlane.f32.xlu0 %v641
        %v643 = vpop.xlane.xlu0 %642
        %v644 = vrot.slane %v643, 4
        %v645 = vadd.f32 %v643, %v644
        %v646 = vrot.slane %v645, 2
        %v647 = vadd.f32 %v645, %v646
        %v648 = vrot.slane %v647, 1
        %v649 = vadd.f32 %v647, %v648
        %s650 = vtos %v649
        %v651 = vmul.f32 %v630, %v636
        %v652 = vmul.f32 %v631, %v637
        %v653 = vsel %vm638, %v651, 0.0
        %v654 = vsel %vm638, %v652, 0.0
        %v655 = vadd.f32 %v653, %v654
        %656 = vadd.xlane.f32.xlu0 %v655
        %v657 = vpop.xlane.xlu0 %656
        %v658 = vrot.slane %v657, 4
        %v659 = vadd.f32 %v657, %v658
        %v660 = vrot.slane %v659, 2
        %v661 = vadd.f32 %v659, %v660
        %v662 = vrot.slane %v661, 1
        %v663 = vadd.f32 %v661, %v662
        %s664 = vtos %v663
        %v665 = vsel %vm638, %v636, 0.0
        %v666 = vsel %vm638, %v637, 0.0
        %v667 = vadd.f32 %v665, %v666
        %668 = vadd.xlane.f32.xlu0 %v667
        %v669 = vpop.xlane.xlu0 %668
        %v670 = vrot.slane %v669, 4
        %v671 = vadd.f32 %v669, %v670
        %v672 = vrot.slane %v671, 2
        %v673 = vadd.f32 %v671, %v672
        %v674 = vrot.slane %v673, 1
        %v675 = vadd.f32 %v673, %v674
        %s676 = vtos %v675
        %vm677 = vcmp.eq.s32.totalorder %v609, 0
        %vm678 = vcmp.eq.s32.totalorder %v609, 1
        %vm679 = vcmp.eq.s32.totalorder %v609, 2
        %v680 = vstv %s676
        %v681 = vsel %vm679, %v680, 0.0
        %v682 = vstv %s664
        %v683 = vsel %vm678, %v682, %v681
        %v684 = vstv %s650
        %v685 = vsel %vm677, %v684, %v683
        %v686 = vld [vmem:[%s373] sm:$0xff]
        %v687 = vadd.f32 %v686, %v685
        %688 = vst [vmem:[%s373] sm:$0xff] %v687
        %s689 = sand.u32 %s176, 1
        %s690 = scalar_lea.sflag [#allocation4], %s689
        %s691 = sand.u32 %s176, 1
        %s692 = smul.addr %s691, 8
        %s693 = scalar_lea.vmem [#allocation8], %s692
        %s694 = sand.u32 %s202, 1
        %s695 = scalar_lea.sflag [#allocation10], %s694
        %s696 = sand.u32 %s202, 1
        %s697 = smul.addr %s696, 8
        %s698 = scalar_lea.vmem [#allocation9], %s697
        // Predicated region
        $region57: #{tpu_custom_call.1} parent=39 // pred_check
          %p699 = pneg %p186
        $region58: #{tpu_custom_call.1} parent=39 // pred_check_branch
          %701 = sbr.rel (%p699) target = $region60
        $region59: #{tpu_custom_call.1} parent=39 // pred_region
          %s702 = sadd.s32 %s32, %s33
          %s703 = smul.u32 2, %s702
          %s705 = ssub.s32 128, 128
          %706 = vsyncadd %s690, %s705
          %s707 = smul.addr %s703, 64
          %s708 = scalar_lea.hbm %s5, %s707
          %s709 = sshll.u32 %s693, 4
          %s710 = int_to_ptr.vmem [resolvable:$true] %s709
          %715 = dma.vmem_to_hbm [thread:$0]  %s710, 128, %s708, %s690, 64, 64, 4
        $region60: #{tpu_custom_call.1} parent=39 // pred_fallthru
          _
        // Predicated region
        $region61: #{tpu_custom_call.1} parent=39 // pred_check
          %p716 = pneg %p212
        $region62: #{tpu_custom_call.1} parent=39 // pred_check_branch
          %718 = sbr.rel (%p716) target = $region64
        $region63: #{tpu_custom_call.1} parent=39 // pred_region
          %s720 = ssub.s32 128, 128
          %721 = vsyncadd %s695, %s720
          %s722 = smul.addr %s32, 128
          %s723 = scalar_lea.hbm %s6, %s722
          %s725 = sshll.u32 %s698, 4
          %s726 = int_to_ptr.vmem [resolvable:$true] %s725
          %728 = dma.vmem_to_hbm [thread:$0]  %s726, 128, %s723, %s695
        $region64: #{tpu_custom_call.1} parent=39 // pred_fallthru
          _
      $region40: #{tpu_custom_call.1} parent=5 // pred_fallthru
        _
      %p729 = scmp.le.s32.totalorder 2, %s23
      // Predicated region
      $region65: #{tpu_custom_call.1} parent=5 // pred_check
        %p730 = pneg %p729
      $region66: #{tpu_custom_call.1} parent=5 // pred_check_branch
        %732 = sbr.rel (%p730) target = $region68
      $region67: #{tpu_custom_call.1} parent=5 // pred_region
        %s733 = ssub.s32 %s23, 2
        // Predicated region
        $region69: #{tpu_custom_call.1} parent=67 // pred_check
          %p734 = pneg %p192
        $region70: #{tpu_custom_call.1} parent=67 // pred_check_branch
          %736 = sbr.rel (%p734) target = $region72
        $region71: #{tpu_custom_call.1} parent=67 // pred_region
          %s737 = sand.u32 %s177, 1
          %s738 = scalar_lea.sflag [#allocation4], %s737
          %s739 = sand.u32 %s177, 1
          %s740 = smul.addr %s739, 8
          %s741 = scalar_lea.vmem [#allocation8], %s740
          %742 = dma.done %s738, 128
        $region72: #{tpu_custom_call.1} parent=67 // pred_fallthru
          _
        // Predicated region
        $region73: #{tpu_custom_call.1} parent=67 // pred_check
          %p743 = pneg %p218
        $region74: #{tpu_custom_call.1} parent=67 // pred_check_branch
          %745 = sbr.rel (%p743) target = $region76
        $region75: #{tpu_custom_call.1} parent=67 // pred_region
          %s746 = sand.u32 %s203, 1
          %s747 = scalar_lea.sflag [#allocation10], %s746
          %s748 = sand.u32 %s203, 1
          %s749 = smul.addr %s748, 8
          %s750 = scalar_lea.vmem [#allocation9], %s749
          %751 = dma.done %s747, 128
        $region76: #{tpu_custom_call.1} parent=67 // pred_fallthru
          _
      $region68: #{tpu_custom_call.1} parent=5 // pred_fallthru
        _
    $region6: #{tpu_custom_call.1} parent=1 // loop_footer
      %s27 = sadd.s32 1, %s23
    $region7: #{tpu_custom_call.1} parent=1 // loop_footer_branch
      %22 = sbr.rel target = $region3
    $region8: #{tpu_custom_call.1} parent=1 // loop_exit
      _
    %752 = vsyncpa [#allocation3], 1
    %s753 = scalar_lea.sflag [#allocation3], 1
    %754 = vsyncpa %s753, 1
    %755 = vsyncpa [#allocation6], 1
    %756 = vsyncpa [#allocation4], 1
    %s757 = scalar_lea.sflag [#allocation4], 1
    %758 = vsyncpa %s757, 1
    %759 = vsyncpa [#allocation10], 1
    %s760 = scalar_lea.sflag [#allocation10], 1
    %761 = vsyncpa %s760, 1

</llo_original>
